<compile_context>
chip_gen: v7x
topology: tpu7x:2x2x1
jax: 0.10.0
libtpu: 0.0.40
codegen_flags: <defaults>
</compile_context>

<pallas_src>
import jax
import jax.numpy as jnp
from jax.experimental import pallas as pl
from jax.experimental.pallas import tpu as pltpu

_LANE = 128                  # TPU lane width
_WIDE_COLS = 1024            # preferred repack width (multiple of 128)
_PALLAS_MIN_ELEMS = 1 << 20  # ~4 MiB f32; below this, fused XLA min is faster


def _min_kernel(x1_ref, x2_ref, o_ref):
    # Pure VPU elementwise min on a lane-dense (tile_rows, cols) block.
    o_ref[...] = jnp.minimum(x1_ref[...], x2_ref[...])


def _tile_bytes_for_device() -> int:
    """Per-buffer tile budget. 2 MiB fits v5e's 16 MiB default scoped VMEM
    (3 arrays x 2 buffers = 12 MiB); v6e/v7x (32 MiB default) take 4 MiB."""
    try:
        kind = jax.devices()[0].device_kind.lower()
    except Exception:
        return 2 << 20
    if "v6" in kind or "v7" in kind:
        return 4 << 20
    return 2 << 20


def _sublane(dtype) -> int:
    """Minimum sublane multiple for packed tiles: 8 (f32), 16 (bf16), 32 (int8/fp8)."""
    itemsize = jnp.dtype(dtype).itemsize
    return max(8, 32 // max(1, itemsize))


def _lane_dense_layout(shape, dtype):
    """Pick a copy-free lane-dense 2D view (rows, cols) plus a tile_rows.

    Returns (rows, cols, tile_rows) or None if no lane-aligned, pad-free view
    exists (caller then falls back to fused jnp.minimum).
    """
    total = 1
    for d in shape:
        total *= int(d)
    itemsize = jnp.dtype(dtype).itemsize
    sub = _sublane(dtype)
    tile_bytes = _tile_bytes_for_device()

    candidates = []
    # (a) Collapse leading dims only: pure-metadata reshape, widest possible
    #     unmasked stores, no repacking of the last dim.
    last = int(shape[-1])
    if last % _LANE == 0:
        candidates.append((total // last, last))
    # (b) Row-major repack to a lane-dense width dividing the element count
    #     exactly (still just a reshape, still no padding).
    for cols in (_WIDE_COLS, 512, 256, _LANE):
        if total % cols == 0:
            candidates.append((total // cols, cols))

    for rows, cols in candidates:
        # Need enough rows for >= 2 full-sublane tiles, and one sublane group
        # of this width must fit in the per-buffer VMEM budget.
        if rows < 2 * sub or sub * cols * itemsize > tile_bytes:
            continue
        tile_rows = (tile_bytes // (cols * itemsize)) // sub * sub
        tile_rows = max(sub, min(tile_rows, pl.cdiv(rows, sub) * sub))
        # Guarantee >= 2 grid steps so v7x's second TensorCore gets a shard.
        if pl.cdiv(rows, tile_rows) < 2:
            tile_rows = max(sub, pl.cdiv(pl.cdiv(rows, 2), sub) * sub)
        return rows, cols, tile_rows
    return None


def _min_of_two_pallas(x1: jax.Array, x2: jax.Array) -> jax.Array:
    """Tiled Pallas path: copy-free lane-dense 2D view -> 1D parallel grid."""
    layout = _lane_dense_layout(x1.shape, x1.dtype)
    if layout is None:
        # No pad-free lane-aligned view: padding would cost more HBM traffic
        # than the fused XLA min, so just fuse.
        return jnp.minimum(x1, x2)

    rows, cols, tile_rows = layout
    x1_2d = x1.reshape(rows, cols)
    x2_2d = x2.reshape(rows, cols)

    grid = (pl.cdiv(rows, tile_rows),)  # partial trailing block handled by masking
    spec = pl.BlockSpec((tile_rows, cols), lambda i: (i, 0))

    out_2d = pl.pallas_call(
        _min_kernel,
        out_shape=jax.ShapeDtypeStruct((rows, cols), x1.dtype),
        grid=grid,
        in_specs=[spec, spec],
        out_specs=spec,
        compiler_params=pltpu.CompilerParams(
            dimension_semantics=("parallel",),
        ),
    )(x1_2d, x2_2d)

    return out_2d.reshape(x1.shape)


def min_of_two(x1: jax.Array, x2: jax.Array) -> jax.Array:
    """Elementwise minimum, matching MinOfTwo.forward semantics."""
    assert x1.shape == x2.shape, "MinOfTwo requires identically shaped inputs"
    assert x1.dtype == x2.dtype, "MinOfTwo requires matching dtypes"
    if x1.size < _PALLAS_MIN_ELEMS:
        # Tiny input: fused XLA min is already at roofline; Pallas dispatch
        # plus wrapper reshapes would dominate.
        return jnp.minimum(x1, x2)
    return _min_of_two_pallas(x1, x2)


if __name__ == "__main__":
    key = jax.random.PRNGKey(0)
    k1, k2, k3, k4, k5, k6, k7, k8 = jax.random.split(key, 8)

    # Module-spec shapes: (N, C, L_in) with batch=2, channels=4, L=16.
    x1 = jax.random.normal(k1, (2, 4, 16), dtype=jnp.float32)
    x2 = jax.random.normal(k2, (2, 4, 16), dtype=jnp.float32)
    out_small = jax.block_until_ready(min_of_two(x1, x2))
    assert out_small.shape == x1.shape and out_small.dtype == x1.dtype
    assert bool(jnp.allclose(out_small, jnp.minimum(x1, x2))), "small-path mismatch"

    # Explicit Pallas path at a small (N, C, L): exercises the >=2-step grid
    # and the masked partial trailing row block (18 rows, 16-row tiles).
    y1 = jax.random.normal(k3, (2, 4, 1152), dtype=jnp.float32)
    y2 = jax.random.normal(k4, (2, 4, 1152), dtype=jnp.float32)
    out_pallas = jax.block_until_ready(_min_of_two_pallas(y1, y2))
    assert out_pallas.shape == y1.shape and out_pallas.dtype == y1.dtype
    assert bool(jnp.allclose(out_pallas, jnp.minimum(y1, y2))), "pallas-path mismatch"

    # Larger input through the public wrapper: lane-aligned last dim, pure
    # metadata reshape, multi-step parallel grid, no padding anywhere.
    z1 = jax.random.normal(k5, (8, 16, 8192), dtype=jnp.float32)
    z2 = jax.random.normal(k6, (8, 16, 8192), dtype=jnp.float32)
    out_big = jax.block_until_ready(min_of_two(z1, z2))
    assert out_big.shape == z1.shape and out_big.dtype == z1.dtype
    assert bool(jnp.allclose(out_big, jnp.minimum(z1, z2))), "tiled-path mismatch"

    # bf16: dtype-aware sublane rounding (tile_rows multiple of 16).
    w1 = jax.random.normal(k7, (16, 32, 2048), dtype=jnp.bfloat16)
    w2 = jax.random.normal(k8, (16, 32, 2048), dtype=jnp.bfloat16)
    out_bf16 = jax.block_until_ready(min_of_two(w1, w2))
    assert out_bf16.shape == w1.shape and out_bf16.dtype == jnp.bfloat16
    assert bool(jnp.array_equal(out_bf16, jnp.minimum(w1, w2))), "bf16-path mismatch"

    print("KERNEL_OK")
</pallas_src>

<mosaic_0001>
module attributes {stable_mosaic.version = 11 : i64} {
  func.func @_min_kernel(%arg0: i32, %arg1: memref<16x512xf32, #tpu.memory_space<vmem>>, %arg2: memref<16x512xf32, #tpu.memory_space<vmem>>, %arg3: memref<16x512xf32, #tpu.memory_space<vmem>>) attributes {dimension_semantics = [#tpu.dimension_semantics<parallel>], iteration_bounds = array<i64: 2>, scalar_prefetch = 0 : i64, scratch_operands = 0 : i64, tpu.core_type = #tpu.core_type<tc>, window_params = [{transform_indices = @transform_0, window_bounds = array<i64: 16, 512>}, {transform_indices = @transform_1, window_bounds = array<i64: 16, 512>}, {transform_indices = @transform_2, window_bounds = array<i64: 16, 512>}]} {
    %c0 = arith.constant 0 : index
    %c0_0 = arith.constant 0 : index
    %0 = vector.load %arg1[%c0, %c0_0] : memref<16x512xf32, #tpu.memory_space<vmem>>, vector<16x512xf32>
    %c0_1 = arith.constant 0 : index
    %c0_2 = arith.constant 0 : index
    %1 = vector.load %arg2[%c0_1, %c0_2] : memref<16x512xf32, #tpu.memory_space<vmem>>, vector<16x512xf32>
    %2 = arith.minimumf %0, %1 : vector<16x512xf32>
    %c0_3 = arith.constant 0 : index
    %c0_4 = arith.constant 0 : index
    %3 = vector.load %arg3[%c0_3, %c0_4] : memref<16x512xf32, #tpu.memory_space<vmem>>, vector<16x512xf32>
    tpu.vector_store %arg3[%c0_3, %c0_4], %2 {strides = array<i32>} : memref<16x512xf32, #tpu.memory_space<vmem>>, vector<16x512xf32>,
    return
  }
  func.func @transform_0(%arg0: i32) -> (i32, i32) {
    %c0_i32 = arith.constant 0 : i32
    %c0_i32_0 = arith.constant 0 : i32
    return %arg0, %c0_i32 : i32, i32
  }
  func.func @transform_1(%arg0: i32) -> (i32, i32) {
    %c0_i32 = arith.constant 0 : i32
    %c0_i32_0 = arith.constant 0 : i32
    return %arg0, %c0_i32 : i32, i32
  }
  func.func @transform_2(%arg0: i32) -> (i32, i32) {
    %c0_i32 = arith.constant 0 : i32
    %c0_i32_0 = arith.constant 0 : i32
    return %arg0, %c0_i32 : i32, i32
  }
}

</mosaic_0001>

<llo_original>
// kernel: tpu_custom_call.1
$region0: #{tpu_custom_call.1}
  #allocation0 [shape = 'u32[]', space=smem, size = 0x4, offset = 0x4, fixed_abs, tag = 'smem constant byte address 0x4 - core index']
  #allocation1 [shape = 'u32[144,128]{1,0:T(1,128)}', space=vmem, size = 0x12000, scoped, tag = 'internal scratch']
  %s0 = inlined_call_operand.hbm [shape: f32[18,512], index: 0, kind: input, shape index: {}]
  %s1 = inlined_call_operand.hbm [shape: f32[18,512], index: 1, kind: input, shape index: {}]
  %s2 = inlined_call_operand.hbm [shape: f32[18,512], index: 2, kind: output, shape index: {}]
  %s3 = sld [smem:[#allocation0]]
  $region49: #{tpu_custom_call.1} parent=0
    _
  %s5 = ssub.s32 1, %s3
  %s6 = scalar_select 0, %s5, %s3
  $region1: #{tpu_custom_call.1} parent=0
    #allocation2 [shape = 'u8[65536]{0}', space=vmem, size = 0x10000, scoped, tag = 'input window, operand 0']
    #allocation3 [shape = 's32[2]{0}', space=sflag, size = 0x8, scoped, tag = 'scoped memory for tpu_custom_call.1']
    #allocation4 [shape = 's32[2]{0}', space=sflag, size = 0x8, scoped, tag = 'scoped memory for tpu_custom_call.1']
    #allocation5 [shape = 'u8[65536]{0}', space=vmem, size = 0x10000, scoped, tag = 'input window, operand 1']
    #allocation6 [shape = 's32[2]{0}', space=sflag, size = 0x8, scoped, tag = 'scoped memory for tpu_custom_call.1']
    #allocation7 [shape = 'u8[65536]{0}', space=vmem, size = 0x10000, scoped, tag = 'output window, operand 0']
    %7 = vsyncpa [#allocation3], 0
    %s8 = scalar_lea.sflag [#allocation3], 1
    %9 = vsyncpa %s8, 0
    %10 = vsyncpa [#allocation6], 0
    %s11 = scalar_lea.sflag [#allocation6], 1
    %12 = vsyncpa %s11, 0
    %13 = vsyncpa [#allocation4], 0
    %s14 = scalar_lea.sflag [#allocation4], 1
    %15 = vsyncpa %s14, 0
    loop: start=0, step=1, limit=4
    $region2: #{tpu_custom_call.1} parent=1 // loop_pre_header
      _
    $region3: #{tpu_custom_call.1} parent=1 // loop_header
      %s17 = sphi 0, %s21
      %p18 = scmp.ge.s32.totalorder %s17, 4
      %s27 = sphi 0, %s29
      %s30 = sphi 0, %s27
      %s31 = sphi 0, %s30
      %s47 = sphi 0, %s31
      %s53 = sphi 0, %s55
      %s56 = sphi 0, %s53
      %s57 = sphi 0, %s56
      %s73 = sphi 0, %s57
      %s79 = sphi 0, %s81
      %s82 = sphi 0, %s79
      %s83 = sphi 0, %s82
      %s99 = sphi 0, %s83
    $region4: #{tpu_custom_call.1} parent=1 // loop_header_branch
      %20 = sbr.rel (%p18) target = $region8
    $region5: #{tpu_custom_call.1} parent=1 // loop_body
      %s22 = ssub.s32 %s17, 1
      %s23 = ssub.s32 %s17, 2
      %s24 = sadd.s32 %s17, 1
      %s25 = ssub.s32 %s17, %s24
      %p26 = scmp.eq.s32.totalorder %s25, 0
      %s28 = sadd.s32 %s27, 1
      %s29 = scalar_select %p26, %s27, %s28
      %p32 = pneg %p26
      %p33 = scmp.eq.s32.totalorder %s17, 1
      %p34 = por %p32, %p33
      %p35 = scmp.ne.s32.totalorder %s27, %s30
      %p36 = scmp.eq.s32.totalorder %s17, 0
      %p37 = por %p35, %p36
      %p38 = scmp.ne.s32.totalorder %s27, %s30
      %p39 = scmp.eq.s32.totalorder %s22, 1
      %p40 = por %p38, %p39
      %p41 = scmp.ne.s32.totalorder %s30, %s31
      %p42 = scmp.eq.s32.totalorder %s22, 0
      %p43 = por %p41, %p42
      %p44 = scmp.ne.s32.totalorder %s30, %s31
      %p45 = scmp.eq.s32.totalorder %s23, 1
      %p46 = por %p44, %p45
      %p48 = scmp.ne.s32.totalorder %s31, %s47
      %p49 = scmp.eq.s32.totalorder %s23, 0
      %p50 = por %p48, %p49
      %s51 = ssub.s32 %s17, %s24
      %p52 = scmp.eq.s32.totalorder %s51, 0
      %s54 = sadd.s32 %s53, 1
      %s55 = scalar_select %p52, %s53, %s54
      %p58 = pneg %p52
      %p59 = scmp.eq.s32.totalorder %s17, 1
      %p60 = por %p58, %p59
      %p61 = scmp.ne.s32.totalorder %s53, %s56
      %p62 = scmp.eq.s32.totalorder %s17, 0
      %p63 = por %p61, %p62
      %p64 = scmp.ne.s32.totalorder %s53, %s56
      %p65 = scmp.eq.s32.totalorder %s22, 1
      %p66 = por %p64, %p65
      %p67 = scmp.ne.s32.totalorder %s56, %s57
      %p68 = scmp.eq.s32.totalorder %s22, 0
      %p69 = por %p67, %p68
      %p70 = scmp.ne.s32.totalorder %s56, %s57
      %p71 = scmp.eq.s32.totalorder %s23, 1
      %p72 = por %p70, %p71
      %p74 = scmp.ne.s32.totalorder %s57, %s73
      %p75 = scmp.eq.s32.totalorder %s23, 0
      %p76 = por %p74, %p75
      %s77 = ssub.s32 %s17, %s24
      %p78 = scmp.eq.s32.totalorder %s77, 0
      %s80 = sadd.s32 %s79, 1
      %s81 = scalar_select %p78, %s79, %s80
      %p84 = pneg %p78
      %p85 = scmp.eq.s32.totalorder %s17, 1
      %p86 = por %p84, %p85
      %p87 = scmp.ne.s32.totalorder %s79, %s82
      %p88 = scmp.eq.s32.totalorder %s17, 0
      %p89 = por %p87, %p88
      %p90 = scmp.ne.s32.totalorder %s79, %s82
      %p91 = scmp.eq.s32.totalorder %s22, 1
      %p92 = por %p90, %p91
      %p93 = scmp.ne.s32.totalorder %s82, %s83
      %p94 = scmp.eq.s32.totalorder %s22, 0
      %p95 = por %p93, %p94
      %p96 = scmp.ne.s32.totalorder %s82, %s83
      %p97 = scmp.eq.s32.totalorder %s23, 1
      %p98 = por %p96, %p97
      %p100 = scmp.ne.s32.totalorder %s83, %s99
      %p101 = scmp.eq.s32.totalorder %s23, 0
      %p102 = por %p100, %p101
      %p103 = scmp.le.s32.totalorder 1, %s17
      %p104 = scmp.lt.s32.totalorder %s17, 3
      %p105 = pnand %p103, %p104
      %p106 = pneg %p105
      // Predicated region
      $region9: #{tpu_custom_call.1} parent=5 // pred_check
        _
      $region10: #{tpu_custom_call.1} parent=5 // pred_check_branch
        %108 = sbr.rel (%p105) target = $region12
      $region11: #{tpu_custom_call.1} parent=5 // pred_region
        %s109 = ssub.s32 %s17, 1
      $region12: #{tpu_custom_call.1} parent=5 // pred_fallthru
        _
      %p110 = scmp.lt.s32.totalorder %s17, 2
      // Predicated region
      $region13: #{tpu_custom_call.1} parent=5 // pred_check
        %p111 = pneg %p110
      $region14: #{tpu_custom_call.1} parent=5 // pred_check_branch
        %113 = sbr.rel (%p111) target = $region16
      $region15: #{tpu_custom_call.1} parent=5 // pred_region
        // Predicated region
        $region17: #{tpu_custom_call.1} parent=15 // pred_check
          %p114 = pneg %p37
        $region18: #{tpu_custom_call.1} parent=15 // pred_check_branch
          %116 = sbr.rel (%p114) target = $region20
        $region19: #{tpu_custom_call.1} parent=15 // pred_region
          %s117 = sand.u32 %s27, 1
          %s118 = scalar_lea.sflag [#allocation3], %s117
          %s119 = sand.u32 %s27, 1
          %s120 = smul.addr %s119, 64
          %s121 = scalar_lea.vmem [#allocation2], %s120
          %s122 = smul.u32 2, %s17
          %s123 = ssub.s32 3, %s122
          %p124 = scmp.lt.s32.totalorder %s123, 2
          %s125 = scalar_select %p124, %s123, 2
          %s126 = smul.u32 128, %s125
          %s127 = smul.u32 %s126, 4
          %s129 = ssub.s32 1024, %s127
          %130 = vsyncadd %s118, %s129
          %p131 = scmp.ne.s32.totalorder 0, %s127
          %s132 = smul.addr %s122, 4
          %s133 = smul.addr %s132, 128
          %s134 = scalar_lea.hbm %s0, %s133
          %s135 = smul.u32 32, %s125
          %s136 = sshll.u32 %s121, 4
          %s137 = int_to_ptr.vmem [resolvable:$true] %s136
          %s138 = sshll.u32 %s135, 4
          %142 = dma.hbm_to_vmem [thread:$0]  (%p131), %s134, %s138, %s137, %s118, 512, 512, 32
        $region20: #{tpu_custom_call.1} parent=15 // pred_fallthru
          _
        // Predicated region
        $region21: #{tpu_custom_call.1} parent=15 // pred_check
          %p143 = pneg %p63
        $region22: #{tpu_custom_call.1} parent=15 // pred_check_branch
          %145 = sbr.rel (%p143) target = $region24
        $region23: #{tpu_custom_call.1} parent=15 // pred_region
          %s146 = sand.u32 %s53, 1
          %s147 = scalar_lea.sflag [#allocation6], %s146
          %s148 = sand.u32 %s53, 1
          %s149 = smul.addr %s148, 64
          %s150 = scalar_lea.vmem [#allocation5], %s149
          %s151 = smul.u32 2, %s17
          %s152 = ssub.s32 3, %s151
          %p153 = scmp.lt.s32.totalorder %s152, 2
          %s154 = scalar_select %p153, %s152, 2
          %s155 = smul.u32 128, %s154
          %s156 = smul.u32 %s155, 4
          %s158 = ssub.s32 1024, %s156
          %159 = vsyncadd %s147, %s158
          %p160 = scmp.ne.s32.totalorder 0, %s156
          %s161 = smul.addr %s151, 4
          %s162 = smul.addr %s161, 128
          %s163 = scalar_lea.hbm %s1, %s162
          %s164 = smul.u32 32, %s154
          %s165 = sshll.u32 %s150, 4
          %s166 = int_to_ptr.vmem [resolvable:$true] %s165
          %s167 = sshll.u32 %s164, 4
          %171 = dma.hbm_to_vmem [thread:$0]  (%p160), %s163, %s167, %s166, %s147, 512, 512, 32
        $region24: #{tpu_custom_call.1} parent=15 // pred_fallthru
          _
      $region16: #{tpu_custom_call.1} parent=5 // pred_fallthru
        _
      %p172 = scmp.le.s32.totalorder 1, %s17
      %p173 = scmp.lt.s32.totalorder %s17, 3
      %p174 = pnand %p172, %p173
      %p175 = pneg %p174
      // Predicated region
      $region25: #{tpu_custom_call.1} parent=5 // pred_check
        _
      $region26: #{tpu_custom_call.1} parent=5 // pred_check_branch
        %177 = sbr.rel (%p174) target = $region28
      $region27: #{tpu_custom_call.1} parent=5 // pred_region
        %s178 = ssub.s32 %s17, 1
        %s179 = sand.u32 %s30, 1
        %s180 = scalar_lea.sflag [#allocation3], %s179
        %s181 = sand.u32 %s30, 1
        %s182 = smul.addr %s181, 64
        %s183 = scalar_lea.vmem [#allocation2], %s182
        // Predicated region
        $region29: #{tpu_custom_call.1} parent=27 // pred_check
          %p184 = pneg %p43
        $region30: #{tpu_custom_call.1} parent=27 // pred_check_branch
          %186 = sbr.rel (%p184) target = $region32
        $region31: #{tpu_custom_call.1} parent=27 // pred_region
          %187 = dma.done %s180, 1024
        $region32: #{tpu_custom_call.1} parent=27 // pred_fallthru
          _
        %s188 = sand.u32 %s56, 1
        %s189 = scalar_lea.sflag [#allocation6], %s188
        %s190 = sand.u32 %s56, 1
        %s191 = smul.addr %s190, 64
        %s192 = scalar_lea.vmem [#allocation5], %s191
        // Predicated region
        $region33: #{tpu_custom_call.1} parent=27 // pred_check
          %p193 = pneg %p69
        $region34: #{tpu_custom_call.1} parent=27 // pred_check_branch
          %195 = sbr.rel (%p193) target = $region36
        $region35: #{tpu_custom_call.1} parent=27 // pred_region
          %196 = dma.done %s189, 1024
        $region36: #{tpu_custom_call.1} parent=27 // pred_fallthru
          _
        %s197 = sand.u32 %s30, 1
        %s198 = scalar_lea.sflag [#allocation3], %s197
        %s199 = sand.u32 %s30, 1
        %s200 = smul.addr %s199, 64
        %s201 = scalar_lea.vmem [#allocation2], %s200
        %p202 = pneg %p43
        %p203 = pneg %p40
        %s204 = sand.u32 %s56, 1
        %s205 = scalar_lea.sflag [#allocation6], %s204
        %s206 = sand.u32 %s56, 1
        %s207 = smul.addr %s206, 64
        %s208 = scalar_lea.vmem [#allocation5], %s207
        %p209 = pneg %p69
        %p210 = pneg %p66
        %p211 = pneg %p95
        %p212 = pneg %p92
        %s213 = sand.u32 %s82, 1
        %s214 = scalar_lea.sflag [#allocation4], %s213
        %s215 = sand.u32 %s82, 1
        %s216 = smul.addr %s215, 64
        %s217 = scalar_lea.vmem [#allocation7], %s216
        %s218 = smul.u32 2, %s22
        %s219 = ssub.s32 3, %s218
        %p220 = scmp.lt.s32.totalorder %s219, 2
        %s221 = scalar_select %p220, %s219, 2
        %s222 = smul.u32 128, %s221
        %s223 = smul.u32 %s222, 4
        %s224 = smul.u32 2, %s22
        %s225 = ssub.s32 3, %s224
        %p226 = scmp.lt.s32.totalorder %s225, 2
        %s227 = scalar_select %p226, %s225, 2
        %s228 = smul.u32 128, %s227
        %s229 = smul.u32 %s228, 4
        %s230 = smul.u32 2, %s22
        %s231 = ssub.s32 3, %s230
        %p232 = scmp.lt.s32.totalorder %s231, 2
        %s233 = scalar_select %p232, %s231, 2
        %s234 = smul.u32 128, %s233
        %s235 = smul.u32 %s234, 4
        %v236 = vld [vmem:[%s183] sm:$0xff]
        %v237 = vld [vmem:[%s183 + $0x8] sm:$0xff]
        %v238 = vld [vmem:[%s183 + $0x10] sm:$0xff]
        %v239 = vld [vmem:[%s183 + $0x18] sm:$0xff]
        %v240 = vld [vmem:[%s183 + $0x20] sm:$0xff]
        %v241 = vld [vmem:[%s183 + $0x28] sm:$0xff]
        %v242 = vld [vmem:[%s183 + $0x30] sm:$0xff]
        %v243 = vld [vmem:[%s183 + $0x38] sm:$0xff]
        %v244 = vld [vmem:[%s192] sm:$0xff]
        %v245 = vld [vmem:[%s192 + $0x8] sm:$0xff]
        %v246 = vld [vmem:[%s192 + $0x10] sm:$0xff]
        %v247 = vld [vmem:[%s192 + $0x18] sm:$0xff]
        %v248 = vld [vmem:[%s192 + $0x20] sm:$0xff]
        %v249 = vld [vmem:[%s192 + $0x28] sm:$0xff]
        %v250 = vld [vmem:[%s192 + $0x30] sm:$0xff]
        %v251 = vld [vmem:[%s192 + $0x38] sm:$0xff]
        %v252 = vmin.f32 %v236, %v244
        %v253 = vmin.f32 %v237, %v245
        %v254 = vmin.f32 %v238, %v246
        %v255 = vmin.f32 %v239, %v247
        %v256 = vmin.f32 %v240, %v248
        %v257 = vmin.f32 %v241, %v249
        %v258 = vmin.f32 %v242, %v250
        %v259 = vmin.f32 %v243, %v251
        %260 = vst [vmem:[%s217] sm:$0xff] %v252
        %261 = vst [vmem:[%s217 + $0x8] sm:$0xff] %v253
        %262 = vst [vmem:[%s217 + $0x10] sm:$0xff] %v254
        %263 = vst [vmem:[%s217 + $0x18] sm:$0xff] %v255
        %264 = vst [vmem:[%s217 + $0x20] sm:$0xff] %v256
        %265 = vst [vmem:[%s217 + $0x28] sm:$0xff] %v257
        %266 = vst [vmem:[%s217 + $0x30] sm:$0xff] %v258
        %267 = vst [vmem:[%s217 + $0x38] sm:$0xff] %v259
        %s268 = sand.u32 %s82, 1
        %s269 = scalar_lea.sflag [#allocation4], %s268
        %s270 = sand.u32 %s82, 1
        %s271 = smul.addr %s270, 64
        %s272 = scalar_lea.vmem [#allocation7], %s271
        // Predicated region
        $region37: #{tpu_custom_call.1} parent=27 // pred_check
          %p273 = pneg %p92
        $region38: #{tpu_custom_call.1} parent=27 // pred_check_branch
          %275 = sbr.rel (%p273) target = $region40
        $region39: #{tpu_custom_call.1} parent=27 // pred_region
          %s276 = smul.u32 2, %s22
          %s277 = ssub.s32 3, %s276
          %p278 = scmp.lt.s32.totalorder %s277, 2
          %s279 = scalar_select %p278, %s277, 2
          %s280 = smul.u32 128, %s279
          %s281 = smul.u32 %s280, 4
          %s283 = ssub.s32 1024, %s281
          %284 = vsyncadd %s269, %s283
          %p285 = scmp.ne.s32.totalorder 0, %s281
          %s286 = smul.addr %s276, 4
          %s287 = smul.addr %s286, 128
          %s288 = scalar_lea.hbm %s2, %s287
          %s289 = smul.u32 32, %s279
          %s290 = sshll.u32 %s272, 4
          %s291 = int_to_ptr.vmem [resolvable:$true] %s290
          %s292 = sshll.u32 %s289, 4
          %296 = dma.vmem_to_hbm [thread:$0]  (%p285), %s291, %s292, %s288, %s269, 512, 512, 32
        $region40: #{tpu_custom_call.1} parent=27 // pred_fallthru
          _
      $region28: #{tpu_custom_call.1} parent=5 // pred_fallthru
        _
      %p297 = scmp.le.s32.totalorder 2, %s17
      // Predicated region
      $region41: #{tpu_custom_call.1} parent=5 // pred_check
        %p298 = pneg %p297
      $region42: #{tpu_custom_call.1} parent=5 // pred_check_branch
        %300 = sbr.rel (%p298) target = $region44
      $region43: #{tpu_custom_call.1} parent=5 // pred_region
        %s301 = ssub.s32 %s17, 2
        // Predicated region
        $region45: #{tpu_custom_call.1} parent=43 // pred_check
          %p302 = pneg %p98
        $region46: #{tpu_custom_call.1} parent=43 // pred_check_branch
          %304 = sbr.rel (%p302) target = $region48
        $region47: #{tpu_custom_call.1} parent=43 // pred_region
          %s305 = sand.u32 %s83, 1
          %s306 = scalar_lea.sflag [#allocation4], %s305
          %s307 = sand.u32 %s83, 1
          %s308 = smul.addr %s307, 64
          %s309 = scalar_lea.vmem [#allocation7], %s308
          %310 = dma.done %s306, 1024
        $region48: #{tpu_custom_call.1} parent=43 // pred_fallthru
          _
      $region44: #{tpu_custom_call.1} parent=5 // pred_fallthru
        _
    $region6: #{tpu_custom_call.1} parent=1 // loop_footer
      %s21 = sadd.s32 1, %s17
    $region7: #{tpu_custom_call.1} parent=1 // loop_footer_branch
      %16 = sbr.rel target = $region3
    $region8: #{tpu_custom_call.1} parent=1 // loop_exit
      _
    %311 = vsyncpa [#allocation3], 1
    %s312 = scalar_lea.sflag [#allocation3], 1
    %313 = vsyncpa %s312, 1
    %314 = vsyncpa [#allocation6], 1
    %s315 = scalar_lea.sflag [#allocation6], 1
    %316 = vsyncpa %s315, 1
    %317 = vsyncpa [#allocation4], 1
    %s318 = scalar_lea.sflag [#allocation4], 1
    %319 = vsyncpa %s318, 1

</llo_original>
